<compile_context>
chip_gen: v7x
topology: tpu7x:2x2x1
jax: 0.10.0
libtpu: 0.0.40
codegen_flags: <defaults>
</compile_context>

<pallas_src>
import functools

import jax
import jax.numpy as jnp
import numpy as np
from jax.experimental import pallas as pl
from jax.experimental.pallas import tpu as pltpu


def _gat_net_kernel(agg_dtype, logit_ref, y_ref, b2_ref, out_ref):
    """One destination-row block: LeakyReLU -> softmax -> p_h @ y_h -> log_softmax."""
    H, tq, _ = logit_ref.shape
    OPAD = y_ref.shape[-1]

    z = jnp.zeros((tq, OPAD), jnp.float32)
    # H is tiny (2) -> Python unroll; switch to lax.fori_loop(unroll=True) for large H.
    for h in range(H):
        # logits already contain att_dst + att_src + att_edge terms and the
        # -1e20 non-edge fill (folded in the wrapper); math stays in f32.
        lg = logit_ref[h].astype(jnp.float32)                           # [tq, N]
        lg = jnp.where(lg > 0, lg, 0.2 * lg)                            # LeakyReLU(0.2); fill -> ~-2e19
        lg = lg - jnp.max(lg, axis=1, keepdims=True)                    # self-loop guarantees a real max
        p = jnp.exp(lg)                                                 # masked entries underflow to 0
        inv = pl.reciprocal(jnp.sum(p, axis=1, keepdims=True),
                            approx=True)                                # EUP slot, ~free
        p = (p * inv).astype(agg_dtype)                                 # normalized softmax weights
        # single 128-lane-wide MXU matmul per head: p_h @ (xp_h @ w2_h) precomputed as y_h
        z = z + jnp.dot(p, y_ref[h], preferred_element_type=jnp.float32)  # [tq, OPAD]

    z = z + b2_ref[...]                                                 # folded bias; pad cols = -1e30
    # log_softmax over the lane-padded class dim, kept in f32 (pad columns
    # exp-underflow to 0 and are sliced off after the call).
    z = z - jnp.max(z, axis=1, keepdims=True)
    out_ref[...] = z - jnp.log(jnp.sum(jnp.exp(z), axis=1, keepdims=True))


def gat_net_forward(x, adj, e_dense, params, H, C, tq=128,
                    agg_dtype=jnp.bfloat16, logit_dtype=jnp.bfloat16):
    """Glue: all grid-invariant precompute + parameter folding + pallas_call."""
    N, Fin = x.shape
    D = e_dense.shape[-1]
    HC = H * C
    O = params["w2"].shape[1]
    OPAD = ((O + 127) // 128) * 128           # lane-dense output width

    tq = min(tq, N)
    assert N % tq == 0 and tq % 8 == 0
    # VMEM sizing: the only streamed operand is the logit slab, double-buffered at
    # 2 * H * tq * N * itemsize bytes (+ resident y/b2).  On v7x (32 MiB scoped /
    # 64 MiB physical) halve tq relative to a v6e choice or keep logit_dtype=bf16;
    # on v6e raise vmem_limit_bytes in CompilerParams if a larger tq is wanted.

    # ---- grid-invariant precompute (once, in the wrapper) -------------------
    xp = x @ params["w1"]                                                # [N, HC]
    xp3 = xp.reshape(N, H, C)
    a_src = jnp.einsum("nhc,hc->nh", xp3, params["att_src"])            # [N, H]
    a_dst = jnp.einsum("nhc,hc->nh", xp3, params["att_dst"])            # [N, H]
    m = jnp.einsum("dhc,hc->dh",
                   params["w_edge_t"].reshape(D, H, C), params["att_edge"])  # [D, H]
    a_edge = jnp.einsum("ijd,dh->hij", e_dense, m)                      # [H, N, N]
    # fold src/dst terms and the adjacency mask into one pre-masked logit tensor;
    # fill = -1e20 so LeakyReLU's 0.2x scaling still underflows exp.
    logits = a_dst.T[:, :, None] + a_src.T[:, None, :] + a_edge         # [H, N(dst), N(src)]
    logits = jnp.where(adj[None, :, :] != 0, logits, jnp.float32(-1e20))
    logits = logits.astype(logit_dtype)                                 # bf16 halves the HBM stream

    # y[h] = xp_h @ w2_h  -> kernel head loop becomes one 128-wide matmul per head.
    w2_pad = jnp.zeros((HC, OPAD), jnp.float32).at[:, :O].set(params["w2"])
    y = jnp.einsum("nhc,hco->hno",
                   xp3, w2_pad.reshape(H, C, OPAD)).astype(agg_dtype)   # [H, N, OPAD]

    # fold the GATConv bias into the output bias; pad columns carry -1e30.
    b2_eff = params["b1"] @ params["w2"] + params["b2"]                  # [O]
    b2_pad = jnp.full((1, OPAD), -1e30, jnp.float32).at[0, :O].set(b2_eff)

    kernel = functools.partial(_gat_net_kernel, agg_dtype)

    out_pad = pl.pallas_call(
        kernel,
        out_shape=jax.ShapeDtypeStruct((N, OPAD), jnp.float32),
        grid_spec=pltpu.PrefetchScalarGridSpec(
            num_scalar_prefetch=0,
            grid=(N // tq,),
            in_specs=[
                pl.BlockSpec((H, tq, N), lambda i: (0, i, 0)),     # pre-masked logits (streamed)
                pl.BlockSpec((H, N, OPAD), lambda i: (0, 0, 0)),   # y = xp_h @ w2_h (resident)
                pl.BlockSpec((1, OPAD), lambda i: (0, 0)),         # folded bias (lane-padded)
            ],
            out_specs=pl.BlockSpec((tq, OPAD), lambda i: (i, 0)),
        ),
        compiler_params=pltpu.CompilerParams(
            dimension_semantics=("parallel",)),                    # megacore sharding on v7x
    )(logits, y, b2_pad)

    return out_pad[:, :O]


def reference_forward(x, adj, e_dense, params, H, C):
    """Pure-JAX f32 reference with identical semantics (dense GAT formulation)."""
    N = x.shape[0]
    D = e_dense.shape[-1]
    HC = H * C
    xp = x @ params["w1"]
    xp3 = xp.reshape(N, H, C)
    a_s = jnp.einsum("nhc,hc->nh", xp3, params["att_src"])
    a_d = jnp.einsum("nhc,hc->nh", xp3, params["att_dst"])
    ef = (e_dense.reshape(N * N, D) @ params["w_edge_t"]).reshape(N, N, H, C)
    a_e = jnp.einsum("ijhc,hc->ijh", ef, params["att_edge"])
    logits = a_d[:, None, :] + a_s[None, :, :] + a_e
    logits = jnp.where(logits > 0, logits, 0.2 * logits)
    logits = jnp.where(adj[:, :, None] > 0, logits, -1e30)
    attn = jax.nn.softmax(logits, axis=1)
    out = jnp.einsum("ijh,jhc->ihc", attn, xp3).reshape(N, HC) + params["b1"]
    z = out @ params["w2"] + params["b2"]
    return jax.nn.log_softmax(z, axis=1)


if __name__ == "__main__":
    # small shapes implied by Net(in_channels, hidden_channels, out_channels, heads, edge_dim)
    N, Fin, C, H, O, D = 16, 8, 16, 2, 4, 4      # nodes, in, hidden, heads, out, edge_dim
    HC = H * C

    key = jax.random.PRNGKey(0)
    keys = jax.random.split(key, 10)
    x = jax.random.normal(keys[0], (N, Fin), jnp.float32)

    # graph: ring + skip edges (src -> dst), no self loops, no duplicates
    src = jnp.concatenate([jnp.arange(N), jnp.arange(N)])
    dst = jnp.concatenate([(jnp.arange(N) + 1) % N, (jnp.arange(N) + 3) % N])
    E = int(src.shape[0])
    edge_attr = jax.random.normal(keys[1], (E, D), jnp.float32)

    # GATConv: remove_self_loops + add_self_loops(fill_value='mean' over incoming edge_attr)
    sums = jnp.zeros((N, D), jnp.float32).at[dst].add(edge_attr)
    cnts = jnp.zeros((N,), jnp.float32).at[dst].add(1.0)
    loop_attr = sums / jnp.maximum(cnts, 1.0)[:, None]

    adj = jnp.zeros((N, N), jnp.float32).at[dst, src].set(1.0)
    e_dense = jnp.zeros((N, N, D), jnp.float32).at[dst, src].set(edge_attr)
    diag = jnp.arange(N)
    adj = adj.at[diag, diag].set(1.0)
    e_dense = e_dense.at[diag, diag].set(loop_attr)

    s = 0.2  # deterministic synthetic weights
    params = dict(
        w1=s * jax.random.normal(keys[2], (Fin, HC), jnp.float32),       # lin_src.weight^T
        att_src=s * jax.random.normal(keys[3], (H, C), jnp.float32),
        att_dst=s * jax.random.normal(keys[4], (H, C), jnp.float32),
        att_edge=s * jax.random.normal(keys[5], (H, C), jnp.float32),
        w_edge_t=s * jax.random.normal(keys[6], (D, HC), jnp.float32),   # lin_edge.weight^T
        b1=s * jax.random.normal(keys[7], (HC,), jnp.float32),           # GATConv bias
        w2=s * jax.random.normal(keys[8], (HC, O), jnp.float32),         # hidden.weight^T
        b2=s * jax.random.normal(keys[9], (O,), jnp.float32),            # hidden.bias
    )

    out = gat_net_forward(x, adj, e_dense, params, H, C)   # tq capped at N -> single grid step
    out = jax.block_until_ready(out)

    ref = reference_forward(x, adj, e_dense, params, H, C)
    # tolerance looser than pure-f32: the logit stream is bf16, the aggregation
    # matmul runs in bf16, and the softmax denominator uses the EUP approximate
    # reciprocal.  Pass logit_dtype=agg_dtype=jnp.float32 for a bit-tighter path.
    np.testing.assert_allclose(np.asarray(out), np.asarray(ref), rtol=2e-2, atol=2e-2)
    print("KERNEL_OK")
</pallas_src>

<mosaic_0001>
module attributes {stable_mosaic.version = 11 : i64} {
  func.func @_gat_net_kernel(%arg0: i32, %arg1: memref<2x16x16xbf16, #tpu.memory_space<vmem>>, %arg2: memref<2x16x128xbf16, #tpu.memory_space<vmem>>, %arg3: memref<1x128xf32, #tpu.memory_space<vmem>>, %arg4: memref<16x128xf32, #tpu.memory_space<vmem>>) attributes {dimension_semantics = [#tpu.dimension_semantics<parallel>], iteration_bounds = array<i64: 1>, scalar_prefetch = 0 : i64, scratch_operands = 0 : i64, tpu.core_type = #tpu.core_type<tc>, window_params = [{transform_indices = @transform_0, window_bounds = array<i64: 2, 16, 16>}, {pipeline_mode = #tpu.pipeline_mode<synchronous>, transform_indices = @transform_1, window_bounds = array<i64: 2, 16, 128>}, {pipeline_mode = #tpu.pipeline_mode<synchronous>, transform_indices = @transform_2, window_bounds = array<i64: 1, 128>}, {transform_indices = @transform_3, window_bounds = array<i64: 16, 128>}]} {
    %cst = arith.constant 0.000000e+00 : f32
    %0 = vector.broadcast %cst : f32 to vector<16x128xf32>
    %c0 = arith.constant 0 : index
    %c0_0 = arith.constant 0 : index
    %c0_1 = arith.constant 0 : index
    %1 = vector.load %arg1[%c0, %c0_0, %c0_1] : memref<2x16x16xbf16, #tpu.memory_space<vmem>>, vector<1x16x16xbf16>
    %2 = vector.shape_cast %1 : vector<1x16x16xbf16> to vector<16x16xbf16>
    %3 = arith.extf %2 : vector<16x16xbf16> to vector<16x16xf32>
    %cst_2 = arith.constant 0.000000e+00 : f32
    %4 = vector.broadcast %cst_2 : f32 to vector<16x16xf32>
    %5 = arith.cmpf ogt, %3, %4 : vector<16x16xf32>
    %cst_3 = arith.constant 2.000000e-01 : f32
    %6 = vector.broadcast %cst_3 : f32 to vector<16x16xf32>
    %7 = arith.mulf %6, %3 : vector<16x16xf32>
    %8 = arith.select %5, %3, %7 : vector<16x16xi1>, vector<16x16xf32>
    %cst_4 = arith.constant dense<0xFF800000> : vector<16xf32>
    %9 = vector.multi_reduction <maximumf>, %8, %cst_4 [1] : vector<16x16xf32> to vector<16xf32>
    %10 = vector.shape_cast %9 : vector<16xf32> to vector<16x1xf32>
    %11 = vector.broadcast %10 : vector<16x1xf32> to vector<16x16xf32>
    %12 = arith.subf %8, %11 : vector<16x16xf32>
    %13 = math.exp %12 : vector<16x16xf32>
    %cst_5 = arith.constant dense<0.000000e+00> : vector<16xf32>
    %14 = vector.multi_reduction <add>, %13, %cst_5 [1] : vector<16x16xf32> to vector<16xf32>
    %15 = vector.shape_cast %14 : vector<16xf32> to vector<16x1xf32>
    %16 = tpu.reciprocal %15 {approx = true} : vector<16x1xf32> -> vector<16x1xf32>
    %17 = vector.broadcast %16 : vector<16x1xf32> to vector<16x16xf32>
    %18 = arith.mulf %13, %17 : vector<16x16xf32>
    %19 = arith.truncf %18 : vector<16x16xf32> to vector<16x16xbf16>
    %c0_6 = arith.constant 0 : index
    %c0_7 = arith.constant 0 : index
    %c0_8 = arith.constant 0 : index
    %20 = vector.load %arg2[%c0_6, %c0_7, %c0_8] : memref<2x16x128xbf16, #tpu.memory_space<vmem>>, vector<1x16x128xbf16>
    %21 = vector.shape_cast %20 : vector<1x16x128xbf16> to vector<16x128xbf16>
    %cst_9 = arith.constant dense<0.000000e+00> : vector<16x128xf32>
    %22 = tpu.matmul %19, %21, %cst_9 {dimension_numbers = #tpu.dot_dimension_numbers<[1], [0], [0], [1], [0, 0, 1, 1], [], []>} : vector<16x16xbf16>, vector<16x128xbf16>, vector<16x128xf32> -> vector<16x128xf32>
    %23 = arith.addf %0, %22 : vector<16x128xf32>
    %c1 = arith.constant 1 : index
    %c0_10 = arith.constant 0 : index
    %c0_11 = arith.constant 0 : index
    %24 = vector.load %arg1[%c1, %c0_10, %c0_11] : memref<2x16x16xbf16, #tpu.memory_space<vmem>>, vector<1x16x16xbf16>
    %25 = vector.shape_cast %24 : vector<1x16x16xbf16> to vector<16x16xbf16>
    %26 = arith.extf %25 : vector<16x16xbf16> to vector<16x16xf32>
    %cst_12 = arith.constant 0.000000e+00 : f32
    %27 = vector.broadcast %cst_12 : f32 to vector<16x16xf32>
    %28 = arith.cmpf ogt, %26, %27 : vector<16x16xf32>
    %cst_13 = arith.constant 2.000000e-01 : f32
    %29 = vector.broadcast %cst_13 : f32 to vector<16x16xf32>
    %30 = arith.mulf %29, %26 : vector<16x16xf32>
    %31 = arith.select %28, %26, %30 : vector<16x16xi1>, vector<16x16xf32>
    %cst_14 = arith.constant dense<0xFF800000> : vector<16xf32>
    %32 = vector.multi_reduction <maximumf>, %31, %cst_14 [1] : vector<16x16xf32> to vector<16xf32>
    %33 = vector.shape_cast %32 : vector<16xf32> to vector<16x1xf32>
    %34 = vector.broadcast %33 : vector<16x1xf32> to vector<16x16xf32>
    %35 = arith.subf %31, %34 : vector<16x16xf32>
    %36 = math.exp %35 : vector<16x16xf32>
    %cst_15 = arith.constant dense<0.000000e+00> : vector<16xf32>
    %37 = vector.multi_reduction <add>, %36, %cst_15 [1] : vector<16x16xf32> to vector<16xf32>
    %38 = vector.shape_cast %37 : vector<16xf32> to vector<16x1xf32>
    %39 = tpu.reciprocal %38 {approx = true} : vector<16x1xf32> -> vector<16x1xf32>
    %40 = vector.broadcast %39 : vector<16x1xf32> to vector<16x16xf32>
    %41 = arith.mulf %36, %40 : vector<16x16xf32>
    %42 = arith.truncf %41 : vector<16x16xf32> to vector<16x16xbf16>
    %c1_16 = arith.constant 1 : index
    %c0_17 = arith.constant 0 : index
    %c0_18 = arith.constant 0 : index
    %43 = vector.load %arg2[%c1_16, %c0_17, %c0_18] : memref<2x16x128xbf16, #tpu.memory_space<vmem>>, vector<1x16x128xbf16>
    %44 = vector.shape_cast %43 : vector<1x16x128xbf16> to vector<16x128xbf16>
    %cst_19 = arith.constant dense<0.000000e+00> : vector<16x128xf32>
    %45 = tpu.matmul %42, %44, %cst_19 {dimension_numbers = #tpu.dot_dimension_numbers<[1], [0], [0], [1], [0, 0, 1, 1], [], []>} : vector<16x16xbf16>, vector<16x128xbf16>, vector<16x128xf32> -> vector<16x128xf32>
    %46 = arith.addf %23, %45 : vector<16x128xf32>
    %c0_20 = arith.constant 0 : index
    %c0_21 = arith.constant 0 : index
    %47 = vector.load %arg3[%c0_20, %c0_21] : memref<1x128xf32, #tpu.memory_space<vmem>>, vector<1x128xf32>
    %48 = vector.broadcast %47 : vector<1x128xf32> to vector<16x128xf32>
    %49 = arith.addf %46, %48 : vector<16x128xf32>
    %cst_22 = arith.constant dense<0xFF800000> : vector<16xf32>
    %50 = vector.multi_reduction <maximumf>, %49, %cst_22 [1] : vector<16x128xf32> to vector<16xf32>
    %51 = vector.shape_cast %50 : vector<16xf32> to vector<16x1xf32>
    %52 = vector.broadcast %51 : vector<16x1xf32> to vector<16x128xf32>
    %53 = arith.subf %49, %52 : vector<16x128xf32>
    %54 = math.exp %53 : vector<16x128xf32>
    %cst_23 = arith.constant dense<0.000000e+00> : vector<16xf32>
    %55 = vector.multi_reduction <add>, %54, %cst_23 [1] : vector<16x128xf32> to vector<16xf32>
    %56 = vector.shape_cast %55 : vector<16xf32> to vector<16x1xf32>
    %57 = math.log %56 : vector<16x1xf32>
    %58 = vector.broadcast %57 : vector<16x1xf32> to vector<16x128xf32>
    %59 = arith.subf %53, %58 : vector<16x128xf32>
    %c0_24 = arith.constant 0 : index
    %c0_25 = arith.constant 0 : index
    %60 = vector.load %arg4[%c0_24, %c0_25] : memref<16x128xf32, #tpu.memory_space<vmem>>, vector<16x128xf32>
    tpu.vector_store %arg4[%c0_24, %c0_25], %59 {strides = array<i32>} : memref<16x128xf32, #tpu.memory_space<vmem>>, vector<16x128xf32>,
    return
  }
  func.func @transform_0(%arg0: i32) -> (i32, i32, i32) {
    %c0_i32 = arith.constant 0 : i32
    %c0_i32_0 = arith.constant 0 : i32
    %c0_i32_1 = arith.constant 0 : i32
    return %c0_i32, %arg0, %c0_i32_0 : i32, i32, i32
  }
  func.func @transform_1(%arg0: i32) -> (i32, i32, i32) {
    %c0_i32 = arith.constant 0 : i32
    %c0_i32_0 = arith.constant 0 : i32
    %c0_i32_1 = arith.constant 0 : i32
    %c0_i32_2 = arith.constant 0 : i32
    return %c0_i32, %c0_i32_0, %c0_i32_1 : i32, i32, i32
  }
  func.func @transform_2(%arg0: i32) -> (i32, i32) {
    %c0_i32 = arith.constant 0 : i32
    %c0_i32_0 = arith.constant 0 : i32
    %c0_i32_1 = arith.constant 0 : i32
    return %c0_i32, %c0_i32_0 : i32, i32
  }
  func.func @transform_3(%arg0: i32) -> (i32, i32) {
    %c0_i32 = arith.constant 0 : i32
    %c0_i32_0 = arith.constant 0 : i32
    return %arg0, %c0_i32 : i32, i32
  }
}

</mosaic_0001>

<llo_original>
// kernel: tpu_custom_call.1
$region0: #{tpu_custom_call.1}
  #allocation0 [shape = 'u32[]', space=smem, size = 0x4, offset = 0x4, fixed_abs, tag = 'smem constant byte address 0x4 - core index']
  #allocation1 [shape = 'u32[144,128]{1,0:T(1,128)}', space=vmem, size = 0x12000, scoped, tag = 'internal scratch']
  %s0 = inlined_call_operand.hbm [shape: bf16[2,16,16], index: 0, kind: input, shape index: {}]
  %s1 = inlined_call_operand.hbm [shape: bf16[2,16,128], index: 1, kind: input, shape index: {}]
  %s2 = inlined_call_operand.vmem [shape: f32[1,128], index: 2, kind: input, shape index: {}]
  %s3 = inlined_call_operand.hbm [shape: f32[16,128], index: 3, kind: output, shape index: {}]
  %s4 = sld [smem:[#allocation0]]
  $region30: #{tpu_custom_call.1} parent=0
    _
  %s6 = ssub.s32 1, %s4
  %s7 = scalar_select 0, %s6, %s4
  $region1: #{tpu_custom_call.1} parent=0
    #allocation2 [shape = 'u8[8192]{0}', space=vmem, size = 0x2000, scoped, tag = 'input window, operand 0, single buffered']
    #allocation3 [shape = 's32[1]{0}', space=sflag, size = 0x4, scoped, tag = 'scoped memory for tpu_custom_call.1']
    #allocation4 [shape = 's32[1]{0}', space=sflag, size = 0x4, scoped, tag = 'scoped memory for tpu_custom_call.1']
    #allocation5 [shape = 'u8[8192]{0}', space=vmem, size = 0x2000, scoped, tag = 'input window, operand 1, single buffered']
    #allocation6 [shape = 's32[1]{0}', space=sflag, size = 0x4, scoped, tag = 'scoped memory for tpu_custom_call.1']
    #allocation7 [shape = 'u8[8192]{0}', space=vmem, size = 0x2000, scoped, tag = 'output window, operand 0, single buffered']
    %8 = vsyncpa [#allocation3], 0
    %9 = vsyncpa [#allocation6], 0
    %10 = vsyncpa [#allocation4], 0
    // Predicated region
    $region2: #{tpu_custom_call.1} parent=1 // pred_check
      _
    $region3: #{tpu_custom_call.1} parent=1 // pred_check_branch
      %12 = sbr.rel (0) target = $region5
    $region4: #{tpu_custom_call.1} parent=1 // pred_region
      %s14 = ssub.s32 256, 256
      %15 = vsyncadd [#allocation3], %s14
      %s16 = sshll.u32 [#allocation2], 4
      %s17 = int_to_ptr.vmem [resolvable:$true] %s16
      %22 = dma.hbm_to_vmem [thread:$0]  %s0, 256, %s17, [#allocation3], 64, 64, 4
    $region5: #{tpu_custom_call.1} parent=1 // pred_fallthru
      _
    // Predicated region
    $region6: #{tpu_custom_call.1} parent=1 // pred_check
      _
    $region7: #{tpu_custom_call.1} parent=1 // pred_check_branch
      %24 = sbr.rel (0) target = $region9
    $region8: #{tpu_custom_call.1} parent=1 // pred_region
      %s26 = ssub.s32 256, 256
      %27 = vsyncadd [#allocation6], %s26
      %s28 = sshll.u32 [#allocation5], 4
      %s29 = int_to_ptr.vmem [resolvable:$true] %s28
      %34 = dma.hbm_to_vmem [thread:$0]  %s1, 256, %s29, [#allocation6], 64, 64, 4
    $region9: #{tpu_custom_call.1} parent=1 // pred_fallthru
      _
    // Predicated region
    $region10: #{tpu_custom_call.1} parent=1 // pred_check
      _
    $region11: #{tpu_custom_call.1} parent=1 // pred_check_branch
      %36 = sbr.rel (0) target = $region13
    $region12: #{tpu_custom_call.1} parent=1 // pred_region
      _
    $region13: #{tpu_custom_call.1} parent=1 // pred_fallthru
      _
    // Predicated region
    $region14: #{tpu_custom_call.1} parent=1 // pred_check
      _
    $region15: #{tpu_custom_call.1} parent=1 // pred_check_branch
      %38 = sbr.rel (0) target = $region17
    $region16: #{tpu_custom_call.1} parent=1 // pred_region
      %39 = dma.done [#allocation3], 256
    $region17: #{tpu_custom_call.1} parent=1 // pred_fallthru
      _
    // Predicated region
    $region18: #{tpu_custom_call.1} parent=1 // pred_check
      _
    $region19: #{tpu_custom_call.1} parent=1 // pred_check_branch
      %41 = sbr.rel (0) target = $region21
    $region20: #{tpu_custom_call.1} parent=1 // pred_region
      %42 = dma.done [#allocation6], 256
    $region21: #{tpu_custom_call.1} parent=1 // pred_fallthru
      _
    %v44 = vld [vmem:[#allocation2] sm:$0xf]
    %v45 = vld [vmem:[#allocation2 + $0x4] sm:$0xf]
    %v46 = vunpack.c.l.bf16 %v44
    %v47 = vunpack.c.l.bf16 %v45
    %vm48 = vcmp.gt.f32.partialorder %v46, 0.0
    %vm49 = vcmp.gt.f32.partialorder %v47, 0.0
    %v50 = vmul.f32 %v46, 0.2
    %v51 = vmul.f32 %v47, 0.2
    %v52 = vsel %vm48, %v46, %v50
    %v53 = vsel %vm49, %v47, %v51
    %vm54 = vcmask 130048
    %v55 = vsel %vm54, %v52, -inf
    %56 = vmax.xlane.f32.xlu0 %v55
    %v57 = vpop.xlane.xlu0 %56
    %v58 = vsel %vm54, %v53, -inf
    %59 = vmax.xlane.f32.xlu0 %v58
    %v60 = vpop.xlane.xlu0 %59
    %v61 = vsub.f32 %v52, %v57
    %v62 = vsub.f32 %v53, %v60
    %v63 = vmul.f32 %v61, 1.442695
    %v64 = vpow.pop %v63
    %v65 = vmul.f32 %v62, 1.442695
    %v66 = vpow.pop %v65
    %v67 = vsel %vm54, %v64, 0.0
    %68 = vadd.xlane.f32.xlu0 %v67
    %v69 = vpop.xlane.xlu0 %68
    %v70 = vsel %vm54, %v66, 0.0
    %71 = vadd.xlane.f32.xlu0 %v70
    %v72 = vpop.xlane.xlu0 %71
    %v73 = vrcp.pop %v69
    %v74 = vrcp.pop %v72
    %v75 = vmul.f32 %v64, %v73
    %v76 = vmul.f32 %v66, %v74
    %v77 = vpack.c.bf16 %v76, %v75
    %v78 = vld [vmem:[#allocation5] sm:$0xf]
    %v79 = vld [vmem:[#allocation5 + $0x4] sm:$0xf]
    %s80 = scalar_lea.vmem [#allocation2], 8
    %v81 = vld [vmem:[%s80] sm:$0xf]
    %v82 = vld [vmem:[%s80 + $0x4] sm:$0xf]
    %v83 = vunpack.c.l.bf16 %v81
    %v84 = vunpack.c.l.bf16 %v82
    %vm85 = vcmp.gt.f32.partialorder %v83, 0.0
    %vm86 = vcmp.gt.f32.partialorder %v84, 0.0
    %v87 = vmul.f32 %v83, 0.2
    %v88 = vmul.f32 %v84, 0.2
    %v89 = vsel %vm85, %v83, %v87
    %v90 = vsel %vm86, %v84, %v88
    %v91 = vsel %vm54, %v89, -inf
    %92 = vmax.xlane.f32.xlu0 %v91
    %v93 = vpop.xlane.xlu0 %92
    %v94 = vsel %vm54, %v90, -inf
    %95 = vmax.xlane.f32.xlu0 %v94
    %v96 = vpop.xlane.xlu0 %95
    %v97 = vsub.f32 %v89, %v93
    %v98 = vsub.f32 %v90, %v96
    %v99 = vmul.f32 %v97, 1.442695
    %v100 = vpow.pop %v99
    %v101 = vmul.f32 %v98, 1.442695
    %v102 = vpow.pop %v101
    %v103 = vsel %vm54, %v100, 0.0
    %104 = vadd.xlane.f32.xlu0 %v103
    %v105 = vpop.xlane.xlu0 %104
    %v106 = vsel %vm54, %v102, 0.0
    %107 = vadd.xlane.f32.xlu0 %v106
    %v108 = vpop.xlane.xlu0 %107
    %v109 = vrcp.pop %v105
    %v110 = vrcp.pop %v108
    %v111 = vmul.f32 %v100, %v109
    %v112 = vmul.f32 %v102, %v110
    %v113 = vpack.c.bf16 %v112, %v111
    %s114 = scalar_lea.vmem [#allocation5], 8
    %v115 = vld [vmem:[%s114] sm:$0xf]
    %v116 = vld [vmem:[%s114 + $0x4] sm:$0xf]
    %v119 = vunpack.c.l.b16 %v115
    %v120 = vunpack.c.l.b16 %v116
    %v121 = vpack.c.b16 %v120, %v119
    %v124 = vsel %vm54, %v113, 0
    %126 = vmatprep.subr.bf16.mxu0 0
    %127 = vmatpush1.bf16.msra.mxu0 %v121
    %128 = vmatprep.subr.bf16.mxu0 0
    %129 = vmatpush1.bf16.msra.mxu0 0
    %130 = vmatprep.subr.bf16.mxu0 0
    %131 = vmatpush1.bf16.msra.mxu0 0
    %132 = vmatprep.subr.bf16.mxu0 0
    %133 = vmatpush1.bf16.msra.mxu0 0
    %134 = vmatprep.subr.bf16.mxu0 0
    %135 = vmatpush1.bf16.msra.mxu0 0
    %136 = vmatprep.subr.bf16.mxu0 0
    %137 = vmatpush1.bf16.msra.mxu0 0
    %138 = vmatprep.subr.bf16.mxu0 0
    %139 = vmatpush1.bf16.msra.mxu0 0
    %140 = vmatprep.subr.bf16.mxu0 0
    %141 = vmatpush1.bf16.msra.mxu0 0
    %142 = vmatprep.subr.bf16.mxu0 0
    %143 = vmatpush1.bf16.msra.mxu0 0
    %144 = vmatprep.subr.bf16.mxu0 0
    %145 = vmatpush1.bf16.msra.mxu0 0
    %146 = vmatprep.subr.bf16.mxu0 0
    %147 = vmatpush1.bf16.msra.mxu0 0
    %148 = vmatprep.subr.bf16.mxu0 0
    %149 = vmatpush1.bf16.msra.mxu0 0
    %150 = vmatprep.subr.bf16.mxu0 0
    %151 = vmatpush1.bf16.msra.mxu0 0
    %152 = vmatprep.subr.bf16.mxu0 0
    %153 = vmatpush1.bf16.msra.mxu0 0
    %154 = vmatprep.subr.bf16.mxu0 0
    %155 = vmatpush1.bf16.msra.mxu0 0
    %156 = vmatprep.subr.bf16.mxu0 0
    %157 = vmatpush1.bf16.msra.mxu0 0
    %158 = vmatprep.mubr.bf16.mxu0 0
    %159 = vmatmul.mubr.bf16.gmra.mrb[0].mxu0 %v124
    %v160 = vpop.f32.mrb[0].mxu0
    %v161 = vadd.f32 0.0, %v160
    %v162 = vpop.f32.mrb[0].mxu0
    %v163 = vpop.f32.mrb[0].mxu0
    %v164 = vadd.f32 0.0, %v163
    %v165 = vpop.f32.mrb[0].mxu0
    %166 = vdwg.mxu0
    %v169 = vunpack.c.l.b16 %v78
    %v170 = vunpack.c.l.b16 %v79
    %v171 = vpack.c.b16 %v170, %v169
    %v174 = vsel %vm54, %v77, 0
    %176 = vmatprep.subr.bf16.mxu0 0
    %177 = vmatpush1.bf16.msra.mxu0 %v171
    %178 = vmatprep.subr.bf16.mxu0 0
    %179 = vmatpush1.bf16.msra.mxu0 0
    %180 = vmatprep.subr.bf16.mxu0 0
    %181 = vmatpush1.bf16.msra.mxu0 0
    %182 = vmatprep.subr.bf16.mxu0 0
    %183 = vmatpush1.bf16.msra.mxu0 0
    %184 = vmatprep.subr.bf16.mxu0 0
    %185 = vmatpush1.bf16.msra.mxu0 0
    %186 = vmatprep.subr.bf16.mxu0 0
    %187 = vmatpush1.bf16.msra.mxu0 0
    %188 = vmatprep.subr.bf16.mxu0 0
    %189 = vmatpush1.bf16.msra.mxu0 0
    %190 = vmatprep.subr.bf16.mxu0 0
    %191 = vmatpush1.bf16.msra.mxu0 0
    %192 = vmatprep.subr.bf16.mxu0 0
    %193 = vmatpush1.bf16.msra.mxu0 0
    %194 = vmatprep.subr.bf16.mxu0 0
    %195 = vmatpush1.bf16.msra.mxu0 0
    %196 = vmatprep.subr.bf16.mxu0 0
    %197 = vmatpush1.bf16.msra.mxu0 0
    %198 = vmatprep.subr.bf16.mxu0 0
    %199 = vmatpush1.bf16.msra.mxu0 0
    %200 = vmatprep.subr.bf16.mxu0 0
    %201 = vmatpush1.bf16.msra.mxu0 0
    %202 = vmatprep.subr.bf16.mxu0 0
    %203 = vmatpush1.bf16.msra.mxu0 0
    %204 = vmatprep.subr.bf16.mxu0 0
    %205 = vmatpush1.bf16.msra.mxu0 0
    %206 = vmatprep.subr.bf16.mxu0 0
    %207 = vmatpush1.bf16.msra.mxu0 0
    %208 = vmatprep.mubr.bf16.mxu0 0
    %209 = vmatmul.mubr.bf16.gmra.mrb[0].mxu0 %v174
    %v210 = vpop.f32.mrb[0].mxu0
    %v211 = vadd.f32 %v161, %v210
    %v212 = vpop.f32.mrb[0].mxu0
    %v213 = vpop.f32.mrb[0].mxu0
    %v214 = vadd.f32 %v164, %v213
    %v215 = vpop.f32.mrb[0].mxu0
    %216 = vdwg.mxu0
    %v217 = vld [vmem:[%s2] sm:$0x1]
    %v219 = vlaneseq
    %v220 = vshrl.u32 %v219, 7
    %v221 = vsub.s32 0, %v220
    %v222 = vrot.slane %v217, %v221
    %v224 = vadd.f32 %v211, %v222
    %v225 = vadd.f32 %v214, %v222
    %226 = vmax.xlane.f32.xlu0 %v224
    %v227 = vpop.xlane.xlu0 %226
    %228 = vmax.xlane.f32.xlu0 %v225
    %v229 = vpop.xlane.xlu0 %228
    %v230 = vsub.f32 %v224, %v227
    %v231 = vsub.f32 %v225, %v229
    %v232 = vmul.f32 %v230, 1.442695
    %v233 = vpow.pop %v232
    %v234 = vmul.f32 %v231, 1.442695
    %v235 = vpow.pop %v234
    %236 = vadd.xlane.f32.xlu0 %v233
    %v237 = vpop.xlane.xlu0 %236
    %238 = vadd.xlane.f32.xlu0 %v235
    %v239 = vpop.xlane.xlu0 %238
    %v240 = vlog2.pop %v237
    %v241 = vmul.f32 %v240, 0.6931472
    %v242 = vlog2.pop %v239
    %v243 = vmul.f32 %v242, 0.6931472
    %v244 = vsub.f32 %v230, %v241
    %v245 = vsub.f32 %v231, %v243
    %246 = vst [vmem:[#allocation7] sm:$0xff] %v244
    %247 = vst [vmem:[#allocation7 + $0x8] sm:$0xff] %v245
    // Predicated region
    $region22: #{tpu_custom_call.1} parent=1 // pred_check
      _
    $region23: #{tpu_custom_call.1} parent=1 // pred_check_branch
      %249 = sbr.rel (0) target = $region25
    $region24: #{tpu_custom_call.1} parent=1 // pred_region
      %s251 = ssub.s32 256, 256
      %252 = vsyncadd [#allocation4], %s251
      %s253 = sshll.u32 [#allocation7], 4
      %s254 = int_to_ptr.vmem [resolvable:$true] %s253
      %259 = dma.vmem_to_hbm [thread:$0]  %s254, 256, %s3, [#allocation4], 128, 128, 8
    $region25: #{tpu_custom_call.1} parent=1 // pred_fallthru
      _
    // Predicated region
    $region26: #{tpu_custom_call.1} parent=1 // pred_check
      _
    $region27: #{tpu_custom_call.1} parent=1 // pred_check_branch
      %261 = sbr.rel (0) target = $region29
    $region28: #{tpu_custom_call.1} parent=1 // pred_region
      %262 = dma.done [#allocation4], 256
    $region29: #{tpu_custom_call.1} parent=1 // pred_fallthru
      _
    %263 = vsyncpa [#allocation3], 1
    %264 = vsyncpa [#allocation6], 1
    %265 = vsyncpa [#allocation4], 1

</llo_original>
